<compile_context>
chip_gen: v5e
topology: v5e:2x2
jax: 0.10.0
libtpu: 0.0.40
codegen_flags: <defaults>
</compile_context>

<pallas_src>
import functools

import jax
import jax.numpy as jnp
from jax.experimental import pallas as pl
from jax.experimental.pallas import tpu as pltpu

EPS = 1e-5


def _vmem_budget_bytes():
    """Per-generation scoped-VMEM budget with headroom below physical capacity."""
    cap = 64 * 1024 * 1024                    # conservative default (v7x physical)
    try:
        info = pltpu.get_tpu_info()
        for attr in ("vmem_capacity_bytes", "vmem_size_bytes", "vmem_bytes"):
            v = getattr(info, attr, None)
            if v:
                cap = int(v)
                break
    except Exception:
        pass
    # 128 MiB parts (v5e/v6e) -> ~96 MiB budget; 64 MiB part (v7x) -> 48 MiB.
    return min(cap * 3 // 4, 100 * 1024 * 1024)


def _pick_tile(hwp, c, max_block_bytes):
    """Largest 128-multiple spatial tile dividing hwp with C*TILE*4 <= cap."""
    k = hwp // 128
    g_cap = max(1, min(k, max_block_bytes // (c * 128 * 4)))
    for g in range(g_cap, 0, -1):
        if k % g == 0:
            return g * 128
    return 128


# ---------------------------------------------------------------------------
# Fused path: pool + attention MLP + apply, one HBM read / one HBM write of x.
# ---------------------------------------------------------------------------
def fused_kernel(x_ref, w1t_ref, b1_ref, bn1s_ref, bn1b_ref,
                 w2t_ref, b2_ref, bns_ref, bias_ref, o_ref, *, inv_hw):
    x = x_ref[...]                                               # (NB, C, HWp)

    # Global average pool (zero padding of HW does not perturb the sum).
    pooled = jnp.sum(x, axis=-1) * inv_hw                        # (NB, C)

    # 1x1 convs as tiny MXU matmuls, batched over the NB resident samples.
    y1 = jnp.dot(pooled, w1t_ref[...],
                 preferred_element_type=jnp.float32) + b1_ref[...]   # (NB, C4)
    y1 = jnp.maximum(y1 * bn1s_ref[...] + bn1b_ref[...], 0.0)        # BN1 + ReLU
    y2 = jnp.dot(y1, w2t_ref[...],
                 preferred_element_type=jnp.float32) + b2_ref[...]   # (NB, C)

    # Channel softmax; the denominator reciprocal goes to the (idle) EUP slot.
    m = jnp.max(y2, axis=-1, keepdims=True)
    e = jnp.exp(y2 - m)
    att = e * pl.reciprocal(jnp.sum(e, axis=-1, keepdims=True), approx=True)

    # Fold attention, outer-BN scale and the +x residual into one scale.
    scale = (att * bns_ref[...] + 1.0)[:, :, None]               # (NB, C, 1)
    o_ref[...] = jnp.maximum(x * scale + bias_ref[...], 0.0)


# ---------------------------------------------------------------------------
# Two-pass fallback for activations that do not fit VMEM.
# ---------------------------------------------------------------------------
def pool_kernel(x_ref, psum_ref, acc_ref, *, n_chunks):
    """Streaming spatial-sum: VALU-only accumulation, one XLU reduce at the end."""
    t = pl.program_id(1)

    @pl.when(t == 0)
    def _():
        acc_ref[...] = jnp.zeros_like(acc_ref)

    # Accumulate 128-lane-wide partials with static lane-aligned slices; the
    # cross-lane reduce is deferred to the last tile (keeps the hot loop VALU).
    acc = acc_ref[...]                                           # (1, C, 128)
    for i in range(n_chunks):
        acc = acc + x_ref[:, :, i * 128:(i + 1) * 128]
    acc_ref[...] = acc

    @pl.when(t == pl.num_programs(1) - 1)
    def _():
        psum_ref[...] = jnp.sum(acc, axis=-1, keepdims=True)     # (1, C, 1)


def apply_kernel(x_ref, scale_ref, bias_ref, o_ref):
    """out = relu(x * eff_scale + eff_bias) on a lane-dense (1, C, TILE) tile."""
    o_ref[...] = jnp.maximum(x_ref[...] * scale_ref[...] + bias_ref[...], 0.0)


# ---------------------------------------------------------------------------
# Wrapper
# ---------------------------------------------------------------------------
@functools.partial(jax.jit, static_argnames=("force_two_pass",))
def channel_att(x, params, *, force_two_pass=False):
    """x: (N, C, H, W) float32.  params: dict of float32 arrays (see init_params)."""
    N, C, H, W = x.shape
    HW = H * W
    HWp = ((HW + 127) // 128) * 128
    budget = _vmem_budget_bytes()
    block_cap = min(budget // 6, 16 * 1024 * 1024)   # ~8 MiB on v7x, up to 16 MiB else
    inv_hw = float(1.0 / HW)

    # ---- Fold static BN statistics / transpose weights once (tiny, O(C^2)) ----
    inv1 = jax.lax.rsqrt(params["rv1"] + EPS)
    bn1_s = params["g1"] * inv1                                    # (1, C4)
    bn1_b = params["be1"] - params["rm1"] * bn1_s                  # (1, C4)
    inv = jax.lax.rsqrt(params["rv"] + EPS)
    bn_s = params["g"] * inv                                       # (1, C)
    eff_bias = (params["be"] - params["rm"] * bn_s).reshape(1, C, 1)
    w1t = params["w1"].T                                           # (C, C4)
    w2t = params["w2"].T                                           # (C4, C)
    C4 = w1t.shape[1]

    x2 = x.reshape(N, C, HW)
    if HWp != HW:
        # Lane-pad so stores stay unmasked; the pooled mean still divides by HW.
        x2 = jnp.pad(x2, ((0, 0), (0, 0), (0, HWp - HW)))

    sample_bytes = C * HWp * 4
    use_fused = (not force_two_pass) and (sample_bytes <= budget // 5)

    if use_fused:
        # Widen the block over batch (helps small C) while staying under the cap.
        nb = 1
        cap = max(sample_bytes, block_cap)
        for d in range(N, 0, -1):
            if N % d == 0 and d * sample_bytes <= cap:
                nb = d
                break
        out = pl.pallas_call(
            functools.partial(fused_kernel, inv_hw=inv_hw),
            out_shape=jax.ShapeDtypeStruct((N, C, HWp), x.dtype),
            grid=(N // nb,),
            in_specs=[
                pl.BlockSpec((nb, C, HWp), lambda i: (i, 0, 0)),
                pl.BlockSpec((C, C4), lambda i: (0, 0)),
                pl.BlockSpec((1, C4), lambda i: (0, 0)),
                pl.BlockSpec((1, C4), lambda i: (0, 0)),
                pl.BlockSpec((1, C4), lambda i: (0, 0)),
                pl.BlockSpec((C4, C), lambda i: (0, 0)),
                pl.BlockSpec((1, C), lambda i: (0, 0)),
                pl.BlockSpec((1, C), lambda i: (0, 0)),
                pl.BlockSpec((1, C, 1), lambda i: (0, 0, 0)),
            ],
            out_specs=pl.BlockSpec((nb, C, HWp), lambda i: (i, 0, 0)),
            compiler_params=pltpu.CompilerParams(
                dimension_semantics=("parallel",),
                vmem_limit_bytes=budget),
        )(x2, w1t, params["b1"], bn1_s, bn1_b, w2t, params["b2"], bn_s, eff_bias)
    else:
        # ---- Pass A: streaming spatial-sum reduce -> pooled sums (N, C, 1) ----
        # Tile bounded so the lane-chunk loop is a short static unroll (<=32).
        tile_a = _pick_tile(HWp, C, min(block_cap, 32 * 128 * C * 4))
        psum = pl.pallas_call(
            functools.partial(pool_kernel, n_chunks=tile_a // 128),
            out_shape=jax.ShapeDtypeStruct((N, C, 1), jnp.float32),
            grid=(N, HWp // tile_a),
            in_specs=[pl.BlockSpec((1, C, tile_a), lambda n, t: (n, 0, t))],
            out_specs=pl.BlockSpec((1, C, 1), lambda n, t: (n, 0, 0)),
            scratch_shapes=[pltpu.VMEM((1, C, 128), jnp.float32)],
            compiler_params=pltpu.CompilerParams(
                dimension_semantics=("parallel", "arbitrary"),
                vmem_limit_bytes=budget),
        )(x2)
        # TODO(synk): on v7x megacore with N == 1, split the spatial reduction
        #             across an outer parallel grid axis so both TCs are used.

        # ---- Tiny attention MLP, batched over all N samples, in plain JAX ----
        pooled = psum[:, :, 0] * inv_hw                                # (N, C)
        y1 = jnp.maximum((pooled @ w1t + params["b1"]) * bn1_s + bn1_b, 0.0)
        y2 = y1 @ w2t + params["b2"]                                   # (N, C)
        att = jax.nn.softmax(y2, axis=-1)
        eff_scale = (att * bn_s + 1.0)[:, :, None]                     # (N, C, 1)

        # ---- Pass B: mem-bound elementwise apply with large lane-dense tiles ----
        tile_b = _pick_tile(HWp, C, block_cap)
        out = pl.pallas_call(
            apply_kernel,
            out_shape=jax.ShapeDtypeStruct((N, C, HWp), x.dtype),
            grid=(N, HWp // tile_b),
            in_specs=[pl.BlockSpec((1, C, tile_b), lambda n, t: (n, 0, t)),
                      pl.BlockSpec((1, C, 1), lambda n, t: (n, 0, 0)),
                      pl.BlockSpec((1, C, 1), lambda n, t: (0, 0, 0))],
            out_specs=pl.BlockSpec((1, C, tile_b), lambda n, t: (n, 0, t)),
            compiler_params=pltpu.CompilerParams(
                dimension_semantics=("parallel", "parallel"),
                vmem_limit_bytes=budget),
        )(x2, eff_scale, eff_bias)

    if HWp != HW:
        out = out[:, :, :HW]
    return out.reshape(N, C, H, W)


# ---------------------------------------------------------------------------
# Pure-JAX reference mirroring the PyTorch forward (eval-mode BN).
# ---------------------------------------------------------------------------
def channel_att_reference(x, p):
    pooled = x.mean(axis=(2, 3))                                     # (N, C)
    y1 = pooled @ p["w1"].T + p["b1"][0]                             # (N, C4)
    y1 = (y1 - p["rm1"][0]) / jnp.sqrt(p["rv1"][0] + EPS) * p["g1"][0] + p["be1"][0]
    y1 = jnp.maximum(y1, 0.0)
    y2 = y1 @ p["w2"].T + p["b2"][0]                                 # (N, C)
    att = jax.nn.softmax(y2, axis=1)
    z = x * att[:, :, None, None]
    inv = 1.0 / jnp.sqrt(p["rv"][0] + EPS)
    z = (z - p["rm"][0][None, :, None, None]) * (inv * p["g"][0])[None, :, None, None] \
        + p["be"][0][None, :, None, None]
    return jnp.maximum(z + x, 0.0)


def init_params(key, channel):
    c4 = channel // 4
    ks = jax.random.split(key, 8)
    lim1 = 1.0 / jnp.sqrt(float(channel))
    lim2 = 1.0 / jnp.sqrt(float(c4))
    return {
        "w1": jax.random.uniform(ks[0], (c4, channel), jnp.float32, -lim1, lim1),
        "b1": jax.random.uniform(ks[1], (1, c4), jnp.float32, -lim1, lim1),
        "g1": 1.0 + 0.1 * jax.random.normal(ks[2], (1, c4), jnp.float32),
        "be1": 0.1 * jax.random.normal(ks[3], (1, c4), jnp.float32),
        "rm1": 0.1 * jax.random.normal(ks[4], (1, c4), jnp.float32),
        "rv1": jnp.ones((1, c4), jnp.float32) * 0.9,
        "w2": jax.random.uniform(ks[5], (channel, c4), jnp.float32, -lim2, lim2),
        "b2": jax.random.uniform(ks[6], (1, channel), jnp.float32, -lim2, lim2),
        "g": 1.0 + 0.1 * jax.random.normal(ks[7], (1, channel), jnp.float32),
        "be": jnp.zeros((1, channel), jnp.float32),
        "rm": jnp.zeros((1, channel), jnp.float32),
        "rv": jnp.ones((1, channel), jnp.float32),
    }


if __name__ == "__main__":
    key = jax.random.PRNGKey(0)
    k_x, k_p, k_x2 = jax.random.split(key, 3)

    N, C, H, W = 2, 8, 16, 16            # channel=8 -> hidden C//4 = 2
    x = jax.random.normal(k_x, (N, C, H, W), jnp.float32)
    params = init_params(k_p, C)
    ref = channel_att_reference(x, params)

    # Tolerances cover MXU-vs-XLA matmul rounding and the EUP approx reciprocal.
    RTOL = ATOL = 2e-3

    # Fused single-pass path (small activations fit VMEM).
    out = jax.block_until_ready(channel_att(x, params))
    assert out.shape == (N, C, H, W)
    err = jnp.max(jnp.abs(out - ref))
    assert jnp.allclose(out, ref, rtol=RTOL, atol=ATOL), f"fused max err = {err}"

    # Two-pass streaming fallback (forced, to exercise the large-activation path).
    out2 = jax.block_until_ready(channel_att(x, params, force_two_pass=True))
    err2 = jnp.max(jnp.abs(out2 - ref))
    assert jnp.allclose(out2, ref, rtol=RTOL, atol=ATOL), f"two-pass max err = {err2}"

    # Non-lane-aligned spatial size exercises the HW padding path.
    xb = jax.random.normal(k_x2, (N, C, 10, 10), jnp.float32)
    outb = jax.block_until_ready(channel_att(xb, params))
    refb = channel_att_reference(xb, params)
    errb = jnp.max(jnp.abs(outb - refb))
    assert jnp.allclose(outb, refb, rtol=RTOL, atol=ATOL), f"padded max err = {errb}"

    print("KERNEL_OK")
</pallas_src>

<mosaic_0001>
module attributes {stable_mosaic.version = 11 : i64} {
  func.func @fused_kernel(%arg0: i32, %arg1: memref<2x8x256xf32, #tpu.memory_space<vmem>>, %arg2: memref<8x2xf32, #tpu.memory_space<vmem>>, %arg3: memref<1x2xf32, #tpu.memory_space<vmem>>, %arg4: memref<1x2xf32, #tpu.memory_space<vmem>>, %arg5: memref<1x2xf32, #tpu.memory_space<vmem>>, %arg6: memref<2x8xf32, #tpu.memory_space<vmem>>, %arg7: memref<1x8xf32, #tpu.memory_space<vmem>>, %arg8: memref<1x8xf32, #tpu.memory_space<vmem>>, %arg9: memref<1x8x1xf32, #tpu.memory_space<vmem>>, %arg10: memref<2x8x256xf32, #tpu.memory_space<vmem>>) attributes {dimension_semantics = [#tpu.dimension_semantics<parallel>], iteration_bounds = array<i64: 1>, scalar_prefetch = 0 : i64, scratch_operands = 0 : i64, tpu.core_type = #tpu.core_type<tc>, window_params = [{transform_indices = @transform_0, window_bounds = array<i64: 2, 8, 256>}, {pipeline_mode = #tpu.pipeline_mode<synchronous>, transform_indices = @transform_1, window_bounds = array<i64: 8, 2>}, {pipeline_mode = #tpu.pipeline_mode<synchronous>, transform_indices = @transform_2, window_bounds = array<i64: 1, 2>}, {pipeline_mode = #tpu.pipeline_mode<synchronous>, transform_indices = @transform_3, window_bounds = array<i64: 1, 2>}, {pipeline_mode = #tpu.pipeline_mode<synchronous>, transform_indices = @transform_4, window_bounds = array<i64: 1, 2>}, {pipeline_mode = #tpu.pipeline_mode<synchronous>, transform_indices = @transform_5, window_bounds = array<i64: 2, 8>}, {pipeline_mode = #tpu.pipeline_mode<synchronous>, transform_indices = @transform_6, window_bounds = array<i64: 1, 8>}, {pipeline_mode = #tpu.pipeline_mode<synchronous>, transform_indices = @transform_7, window_bounds = array<i64: 1, 8>}, {pipeline_mode = #tpu.pipeline_mode<synchronous>, transform_indices = @transform_8, window_bounds = array<i64: 1, 8, 1>}, {transform_indices = @transform_9, window_bounds = array<i64: 2, 8, 256>}]} {
    %c0 = arith.constant 0 : index
    %c0_0 = arith.constant 0 : index
    %c0_1 = arith.constant 0 : index
    %0 = vector.load %arg1[%c0, %c0_0, %c0_1] : memref<2x8x256xf32, #tpu.memory_space<vmem>>, vector<2x8x256xf32>
    %cst = arith.constant dense<0.000000e+00> : vector<2x8xf32>
    %1 = vector.multi_reduction <add>, %0, %cst [2] : vector<2x8x256xf32> to vector<2x8xf32>
    %cst_2 = arith.constant 3.906250e-03 : f32
    %2 = vector.broadcast %cst_2 : f32 to vector<2x8xf32>
    %3 = arith.mulf %1, %2 : vector<2x8xf32>
    %c0_3 = arith.constant 0 : index
    %c0_4 = arith.constant 0 : index
    %4 = vector.load %arg2[%c0_3, %c0_4] : memref<8x2xf32, #tpu.memory_space<vmem>>, vector<8x2xf32>
    %cst_5 = arith.constant dense<0.000000e+00> : vector<2x2xf32>
    %5 = tpu.matmul %3, %4, %cst_5 {dimension_numbers = #tpu.dot_dimension_numbers<[1], [0], [0], [1], [0, 0, 1, 1], [], []>} : vector<2x8xf32>, vector<8x2xf32>, vector<2x2xf32> -> vector<2x2xf32>
    %c0_6 = arith.constant 0 : index
    %c0_7 = arith.constant 0 : index
    %6 = vector.load %arg3[%c0_6, %c0_7] : memref<1x2xf32, #tpu.memory_space<vmem>>, vector<1x2xf32>
    %7 = vector.broadcast %6 : vector<1x2xf32> to vector<2x2xf32>
    %8 = arith.addf %5, %7 : vector<2x2xf32>
    %c0_8 = arith.constant 0 : index
    %c0_9 = arith.constant 0 : index
    %9 = vector.load %arg4[%c0_8, %c0_9] : memref<1x2xf32, #tpu.memory_space<vmem>>, vector<1x2xf32>
    %10 = vector.broadcast %9 : vector<1x2xf32> to vector<2x2xf32>
    %11 = arith.mulf %8, %10 : vector<2x2xf32>
    %c0_10 = arith.constant 0 : index
    %c0_11 = arith.constant 0 : index
    %12 = vector.load %arg5[%c0_10, %c0_11] : memref<1x2xf32, #tpu.memory_space<vmem>>, vector<1x2xf32>
    %13 = vector.broadcast %12 : vector<1x2xf32> to vector<2x2xf32>
    %14 = arith.addf %11, %13 : vector<2x2xf32>
    %cst_12 = arith.constant 0.000000e+00 : f32
    %15 = vector.broadcast %cst_12 : f32 to vector<2x2xf32>
    %16 = arith.maximumf %14, %15 : vector<2x2xf32>
    %c0_13 = arith.constant 0 : index
    %c0_14 = arith.constant 0 : index
    %17 = vector.load %arg6[%c0_13, %c0_14] : memref<2x8xf32, #tpu.memory_space<vmem>>, vector<2x8xf32>
    %cst_15 = arith.constant dense<0.000000e+00> : vector<2x8xf32>
    %18 = tpu.matmul %16, %17, %cst_15 {dimension_numbers = #tpu.dot_dimension_numbers<[1], [0], [0], [1], [0, 0, 1, 1], [], []>} : vector<2x2xf32>, vector<2x8xf32>, vector<2x8xf32> -> vector<2x8xf32>
    %c0_16 = arith.constant 0 : index
    %c0_17 = arith.constant 0 : index
    %19 = vector.load %arg7[%c0_16, %c0_17] : memref<1x8xf32, #tpu.memory_space<vmem>>, vector<1x8xf32>
    %20 = vector.broadcast %19 : vector<1x8xf32> to vector<2x8xf32>
    %21 = arith.addf %18, %20 : vector<2x8xf32>
    %cst_18 = arith.constant dense<0xFF800000> : vector<2xf32>
    %22 = vector.multi_reduction <maximumf>, %21, %cst_18 [1] : vector<2x8xf32> to vector<2xf32>
    %23 = vector.shape_cast %22 : vector<2xf32> to vector<2x1xf32>
    %24 = vector.broadcast %23 : vector<2x1xf32> to vector<2x8xf32>
    %25 = arith.subf %21, %24 : vector<2x8xf32>
    %26 = math.exp %25 : vector<2x8xf32>
    %cst_19 = arith.constant dense<0.000000e+00> : vector<2xf32>
    %27 = vector.multi_reduction <add>, %26, %cst_19 [1] : vector<2x8xf32> to vector<2xf32>
    %28 = vector.shape_cast %27 : vector<2xf32> to vector<2x1xf32>
    %29 = tpu.reciprocal %28 {approx = true} : vector<2x1xf32> -> vector<2x1xf32>
    %30 = vector.broadcast %29 : vector<2x1xf32> to vector<2x8xf32>
    %31 = arith.mulf %26, %30 : vector<2x8xf32>
    %c0_20 = arith.constant 0 : index
    %c0_21 = arith.constant 0 : index
    %32 = vector.load %arg8[%c0_20, %c0_21] : memref<1x8xf32, #tpu.memory_space<vmem>>, vector<1x8xf32>
    %33 = vector.broadcast %32 : vector<1x8xf32> to vector<2x8xf32>
    %34 = arith.mulf %31, %33 : vector<2x8xf32>
    %cst_22 = arith.constant 1.000000e+00 : f32
    %35 = vector.broadcast %cst_22 : f32 to vector<2x8xf32>
    %36 = arith.addf %34, %35 : vector<2x8xf32>
    %37 = vector.shape_cast %36 : vector<2x8xf32> to vector<2x8x1xf32>
    %38 = vector.broadcast %37 : vector<2x8x1xf32> to vector<2x8x256xf32>
    %39 = arith.mulf %0, %38 : vector<2x8x256xf32>
    %c0_23 = arith.constant 0 : index
    %c0_24 = arith.constant 0 : index
    %c0_25 = arith.constant 0 : index
    %40 = vector.load %arg9[%c0_23, %c0_24, %c0_25] : memref<1x8x1xf32, #tpu.memory_space<vmem>>, vector<1x8x1xf32>
    %41 = vector.broadcast %40 : vector<1x8x1xf32> to vector<2x8x256xf32>
    %42 = arith.addf %39, %41 : vector<2x8x256xf32>
    %cst_26 = arith.constant 0.000000e+00 : f32
    %43 = vector.broadcast %cst_26 : f32 to vector<2x8x256xf32>
    %44 = arith.maximumf %42, %43 : vector<2x8x256xf32>
    %c0_27 = arith.constant 0 : index
    %c0_28 = arith.constant 0 : index
    %c0_29 = arith.constant 0 : index
    %45 = vector.load %arg10[%c0_27, %c0_28, %c0_29] : memref<2x8x256xf32, #tpu.memory_space<vmem>>, vector<2x8x256xf32>
    tpu.vector_store %arg10[%c0_27, %c0_28, %c0_29], %44 {strides = array<i32>} : memref<2x8x256xf32, #tpu.memory_space<vmem>>, vector<2x8x256xf32>,
    return
  }
  func.func @transform_0(%arg0: i32) -> (i32, i32, i32) {
    %c0_i32 = arith.constant 0 : i32
    %c0_i32_0 = arith.constant 0 : i32
    %c0_i32_1 = arith.constant 0 : i32
    return %arg0, %c0_i32, %c0_i32_0 : i32, i32, i32
  }
  func.func @transform_1(%arg0: i32) -> (i32, i32) {
    %c0_i32 = arith.constant 0 : i32
    %c0_i32_0 = arith.constant 0 : i32
    %c0_i32_1 = arith.constant 0 : i32
    return %c0_i32, %c0_i32_0 : i32, i32
  }
  func.func @transform_2(%arg0: i32) -> (i32, i32) {
    %c0_i32 = arith.constant 0 : i32
    %c0_i32_0 = arith.constant 0 : i32
    %c0_i32_1 = arith.constant 0 : i32
    return %c0_i32, %c0_i32_0 : i32, i32
  }
  func.func @transform_3(%arg0: i32) -> (i32, i32) {
    %c0_i32 = arith.constant 0 : i32
    %c0_i32_0 = arith.constant 0 : i32
    %c0_i32_1 = arith.constant 0 : i32
    return %c0_i32, %c0_i32_0 : i32, i32
  }
  func.func @transform_4(%arg0: i32) -> (i32, i32) {
    %c0_i32 = arith.constant 0 : i32
    %c0_i32_0 = arith.constant 0 : i32
    %c0_i32_1 = arith.constant 0 : i32
    return %c0_i32, %c0_i32_0 : i32, i32
  }
  func.func @transform_5(%arg0: i32) -> (i32, i32) {
    %c0_i32 = arith.constant 0 : i32
    %c0_i32_0 = arith.constant 0 : i32
    %c0_i32_1 = arith.constant 0 : i32
    return %c0_i32, %c0_i32_0 : i32, i32
  }
  func.func @transform_6(%arg0: i32) -> (i32, i32) {
    %c0_i32 = arith.constant 0 : i32
    %c0_i32_0 = arith.constant 0 : i32
    %c0_i32_1 = arith.constant 0 : i32
    return %c0_i32, %c0_i32_0 : i32, i32
  }
  func.func @transform_7(%arg0: i32) -> (i32, i32) {
    %c0_i32 = arith.constant 0 : i32
    %c0_i32_0 = arith.constant 0 : i32
    %c0_i32_1 = arith.constant 0 : i32
    return %c0_i32, %c0_i32_0 : i32, i32
  }
  func.func @transform_8(%arg0: i32) -> (i32, i32, i32) {
    %c0_i32 = arith.constant 0 : i32
    %c0_i32_0 = arith.constant 0 : i32
    %c0_i32_1 = arith.constant 0 : i32
    %c0_i32_2 = arith.constant 0 : i32
    return %c0_i32, %c0_i32_0, %c0_i32_1 : i32, i32, i32
  }
  func.func @transform_9(%arg0: i32) -> (i32, i32, i32) {
    %c0_i32 = arith.constant 0 : i32
    %c0_i32_0 = arith.constant 0 : i32
    %c0_i32_1 = arith.constant 0 : i32
    return %arg0, %c0_i32, %c0_i32_0 : i32, i32, i32
  }
}

</mosaic_0001>

<llo_original>
// kernel: channel_att.1
$region0: #{channel_att.1}
  #allocation0 [shape = 'u32[]', space=smem, size = 0x4, offset = 0x4, fixed_abs, tag = 'smem constant byte address 0x4 - core index']
  #allocation1 [shape = 'u32[72,128]{1,0:T(1,128)}', space=vmem, size = 0x9000, scoped, tag = 'internal scratch']
  %s0 = inlined_call_operand.vmem [shape: f32[2,8,256], index: 0, kind: input, shape index: {}]
  %s1 = inlined_call_operand.vmem [shape: f32[8,2], index: 1, kind: input, shape index: {}]
  %s2 = inlined_call_operand.vmem [shape: f32[1,2], index: 2, kind: input, shape index: {}]
  %s3 = inlined_call_operand.vmem [shape: f32[1,2], index: 3, kind: input, shape index: {}]
  %s4 = inlined_call_operand.vmem [shape: f32[1,2], index: 4, kind: input, shape index: {}]
  %s5 = inlined_call_operand.vmem [shape: f32[2,8], index: 5, kind: input, shape index: {}]
  %s6 = inlined_call_operand.vmem [shape: f32[1,8], index: 6, kind: input, shape index: {}]
  %s7 = inlined_call_operand.vmem [shape: f32[1,8], index: 7, kind: input, shape index: {}]
  %s8 = inlined_call_operand.vmem [shape: f32[1,8,1], index: 8, kind: input, shape index: {}]
  %s9 = inlined_call_operand.vmem [shape: f32[2,8,256], index: 9, kind: output, shape index: {}]
  %s10 = sld [smem:[#allocation0]]
  $region46: #{channel_att.1} parent=0
    _
  %s12 = ssub.s32 1, %s10
  %s13 = scalar_select 0, %s12, %s10
  // Predicated region
  $region2: #{channel_att.1} parent=0 // pred_check
    _
  $region3: #{channel_att.1} parent=0 // pred_check_branch
    %15 = sbr.rel (0) target = $region5
  $region4: #{channel_att.1} parent=0 // pred_region
    _
  $region5: #{channel_att.1} parent=0 // pred_fallthru
    _
  // Predicated region
  $region6: #{channel_att.1} parent=0 // pred_check
    _
  $region7: #{channel_att.1} parent=0 // pred_check_branch
    %17 = sbr.rel (0) target = $region9
  $region8: #{channel_att.1} parent=0 // pred_region
    _
  $region9: #{channel_att.1} parent=0 // pred_fallthru
    _
  // Predicated region
  $region10: #{channel_att.1} parent=0 // pred_check
    _
  $region11: #{channel_att.1} parent=0 // pred_check_branch
    %19 = sbr.rel (0) target = $region13
  $region12: #{channel_att.1} parent=0 // pred_region
    _
  $region13: #{channel_att.1} parent=0 // pred_fallthru
    _
  // Predicated region
  $region14: #{channel_att.1} parent=0 // pred_check
    _
  $region15: #{channel_att.1} parent=0 // pred_check_branch
    %21 = sbr.rel (0) target = $region17
  $region16: #{channel_att.1} parent=0 // pred_region
    _
  $region17: #{channel_att.1} parent=0 // pred_fallthru
    _
  // Predicated region
  $region18: #{channel_att.1} parent=0 // pred_check
    _
  $region19: #{channel_att.1} parent=0 // pred_check_branch
    %23 = sbr.rel (0) target = $region21
  $region20: #{channel_att.1} parent=0 // pred_region
    _
  $region21: #{channel_att.1} parent=0 // pred_fallthru
    _
  // Predicated region
  $region22: #{channel_att.1} parent=0 // pred_check
    _
  $region23: #{channel_att.1} parent=0 // pred_check_branch
    %25 = sbr.rel (0) target = $region25
  $region24: #{channel_att.1} parent=0 // pred_region
    _
  $region25: #{channel_att.1} parent=0 // pred_fallthru
    _
  // Predicated region
  $region26: #{channel_att.1} parent=0 // pred_check
    _
  $region27: #{channel_att.1} parent=0 // pred_check_branch
    %27 = sbr.rel (0) target = $region29
  $region28: #{channel_att.1} parent=0 // pred_region
    _
  $region29: #{channel_att.1} parent=0 // pred_fallthru
    _
  // Predicated region
  $region30: #{channel_att.1} parent=0 // pred_check
    _
  $region31: #{channel_att.1} parent=0 // pred_check_branch
    %29 = sbr.rel (0) target = $region33
  $region32: #{channel_att.1} parent=0 // pred_region
    _
  $region33: #{channel_att.1} parent=0 // pred_fallthru
    _
  // Predicated region
  $region34: #{channel_att.1} parent=0 // pred_check
    _
  $region35: #{channel_att.1} parent=0 // pred_check_branch
    %31 = sbr.rel (0) target = $region37
  $region36: #{channel_att.1} parent=0 // pred_region
    _
  $region37: #{channel_att.1} parent=0 // pred_fallthru
    _
  %v32 = vld [vmem:[%s0] sm:$0xff]
  %v33 = vld [vmem:[%s0 + $0x8] sm:$0xff]
  %v34 = vld [vmem:[%s0 + $0x10] sm:$0xff]
  %v35 = vld [vmem:[%s0 + $0x18] sm:$0xff]
  %v36 = vadd.f32 %v32, %v33
  %37 = vadd.xlane.f32.xlu0 %v36
  %v38 = vpop.xlane.xlu0 %37
  %v39 = vadd.f32 %v34, %v35
  %40 = vadd.xlane.f32.xlu0 %v39
  %v41 = vpop.xlane.xlu0 %40
  %v42 = vmul.f32 %v38, 0.00390625
  %v43 = vmul.f32 %v41, 0.00390625
  %v44 = vld [vmem:[%s1] sm:$0xff]
  %v45 = vld [vmem:[%s2] sm:$0x1]
  %v47 = vperm.slane %v45, 0
  %v51 = vlaneseq
  %v52 = vand.u32 %v51, 127
  %v53 = vperm.slane %v42, %v52
  %v54 = vperm.slane %v43, %v52
  %vm55 = vcmask 1041409
  %v56 = vsel %vm55, %v54, %v53
  %vm57 = vcmask 64512
  %v58 = vsel %vm57, %v56, 0
  %60 = vmatpush.msra.mxu0 0.0
  %61 = vmatpush.msra.mxu0 0.0
  %62 = vmatpush.msra.mxu0 0.0
  %63 = vmatpush.msra.mxu0 0.0
  %64 = vmatpush.msra.mxu0 0.0
  %65 = vmatpush.msra.mxu0 0.0
  %66 = vmatpush.msra.mxu0 0.0
  %67 = vmatpush.msra.mxu0 0.0
  %68 = vmatpush.msra.mxu0 0.0
  %69 = vmatpush.msra.mxu0 0.0
  %70 = vmatpush.msra.mxu0 0.0
  %71 = vmatpush.msra.mxu0 0.0
  %72 = vmatpush.msra.mxu0 0.0
  %73 = vmatpush.msra.mxu0 0.0
  %74 = vmatpush.msra.mxu0 0.0
  %75 = vmatpush.msra.mxu0 %v44
  %76 = vmatmul.f32.gmra.mxu0 %v58
  %v77 = vpop.f32.mrf.mxu0
  %v78 = vadd.f32 %v47, %v77
  %79 = vdwg.mxu0
  %v80 = vld [vmem:[%s3] sm:$0x1]
  %v82 = vperm.slane %v80, 0
  %v84 = vmul.f32 %v78, %v82
  %v85 = vld [vmem:[%s4] sm:$0x1]
  %v87 = vperm.slane %v85, 0
  %v89 = vadd.f32 %v84, %v87
  %v90 = vmax.f32 %v89, 0.0
  %v91 = vld [vmem:[%s5] sm:$0x3]
  %v92 = vld [vmem:[%s6] sm:$0x1]
  %v94 = vperm.slane %v92, 0
  %vm96 = vcmask 15360
  %v98 = vsel %vm96, %v90, 0
  %vm100 = vcmask 1041408
  %v102 = vsel %vm100, %v91, 0
  %104 = vmatpush.msra.mxu0 0.0
  %105 = vmatpush.msra.mxu0 0.0
  %106 = vmatpush.msra.mxu0 0.0
  %107 = vmatpush.msra.mxu0 0.0
  %108 = vmatpush.msra.mxu0 0.0
  %109 = vmatpush.msra.mxu0 0.0
  %110 = vmatpush.msra.mxu0 0.0
  %111 = vmatpush.msra.mxu0 0.0
  %112 = vmatpush.msra.mxu0 0.0
  %113 = vmatpush.msra.mxu0 0.0
  %114 = vmatpush.msra.mxu0 0.0
  %115 = vmatpush.msra.mxu0 0.0
  %116 = vmatpush.msra.mxu0 0.0
  %117 = vmatpush.msra.mxu0 0.0
  %118 = vmatpush.msra.mxu0 0.0
  %119 = vmatpush.msra.mxu0 %v102
  %120 = vmatmul.f32.gmra.mxu0 %v98
  %v121 = vpop.f32.mrf.mxu0
  %v122 = vadd.f32 %v94, %v121
  %123 = vdwg.mxu0
  %vm124 = vcmask 58368
  %v125 = vsel %vm124, %v122, -inf
  %126 = vmax.xlane.f32.xlu0 %v125
  %v127 = vpop.xlane.xlu0 %126
  %v128 = vsub.f32 %v122, %v127
  %v129 = vmul.f32 %v128, 1.442695
  %v130 = vpow.pop %v129
  %v131 = vsel %vm124, %v130, 0.0
  %132 = vadd.xlane.f32.xlu0 %v131
  %v133 = vpop.xlane.xlu0 %132
  %v134 = vrcp.pop %v133
  %v135 = vmul.f32 %v130, %v134
  %v136 = vld [vmem:[%s7] sm:$0x1]
  %v138 = vperm.slane %v136, 0
  %v140 = vmul.f32 %v135, %v138
  %v141 = vadd.f32 %v140, 1.0
  %v142 = vperm.slane %v141, 0
  %v143 = vlaneseq
  %v144 = vshrl.u32 %v143, 7
  %146 = vset.pattern.permute.xlu0 %v144
  %147 = vperm.xlu0 %146, %v142
  %v148 = vpop.permute.xlu0 %147
  %v149 = vperm.slane %v141, 1
  %v150 = vlaneseq
  %v151 = vshrl.u32 %v150, 7
  %153 = vset.pattern.permute.xlu0 %v151
  %154 = vperm.xlu0 %153, %v149
  %v155 = vpop.permute.xlu0 %154
  %v156 = vmul.f32 %v32, %v148
  %v157 = vmul.f32 %v33, %v148
  %v158 = vmul.f32 %v34, %v155
  %v159 = vmul.f32 %v35, %v155
  %v160 = vld [vmem:[%s8] sm:$0xff]
  %162 = vset.pattern.permute.xlu0 0
  %163 = vperm.xlu0 %162, %v160
  %v164 = vpop.permute.xlu0 %163
  %v166 = vadd.f32 %v156, %v164
  %v167 = vadd.f32 %v157, %v164
  %v168 = vadd.f32 %v158, %v164
  %v169 = vadd.f32 %v159, %v164
  %v170 = vmax.f32 %v166, 0.0
  %v171 = vmax.f32 %v167, 0.0
  %v172 = vmax.f32 %v168, 0.0
  %v173 = vmax.f32 %v169, 0.0
  %174 = vst [vmem:[%s9] sm:$0xff] %v170
  %175 = vst [vmem:[%s9 + $0x8] sm:$0xff] %v171
  %176 = vst [vmem:[%s9 + $0x10] sm:$0xff] %v172
  %177 = vst [vmem:[%s9 + $0x18] sm:$0xff] %v173
  // Predicated region
  $region38: #{channel_att.1} parent=0 // pred_check
    _
  $region39: #{channel_att.1} parent=0 // pred_check_branch
    %179 = sbr.rel (0) target = $region41
  $region40: #{channel_att.1} parent=0 // pred_region
    _
  $region41: #{channel_att.1} parent=0 // pred_fallthru
    _
  // Predicated region
  $region42: #{channel_att.1} parent=0 // pred_check
    _
  $region43: #{channel_att.1} parent=0 // pred_check_branch
    %181 = sbr.rel (0) target = $region45
  $region44: #{channel_att.1} parent=0 // pred_region
    _
  $region45: #{channel_att.1} parent=0 // pred_fallthru
    _

</llo_original>
